<compile_context>
chip_gen: v7x
topology: tpu7x:2x2x1
jax: 0.10.0
libtpu: 0.0.40
codegen_flags: <defaults>
</compile_context>

<pallas_src>
import functools

import jax
import jax.numpy as jnp
from jax.experimental import pallas as pl
from jax.experimental.pallas import tpu as pltpu


# ----------------------------------------------------------------------------
# Pallas kernel: grid = (layer, sample_tile)
# ----------------------------------------------------------------------------
def _criterion_kernel(logits_ref, tgt_ref, clsw_ref, out_ref, acc_ref, *,
                      num_classes, focal_scaler):
    # logits_ref : (C, TS, 128) f32  class planes, samples on (sublane, lane)
    # tgt_ref    : (TS, 128)    f32  original targets (0/1/2), -1.0 on padding
    # clsw_ref   : (4,)         f32  SMEM class weights [w0, w1, w2, 0]
    # out_ref    : (8, 128)     f32  row j broadcasts scalar result j:
    #   [0] loss_ce [1] loss_NW [2] loss_preFoG [3] loss_FoG [4] class_error
    # acc_ref    : (16, 128)    f32  rows 0..7 numerators, rows 8..15 denominators
    C = num_classes
    s_idx = pl.program_id(1)

    @pl.when(s_idx == 0)
    def _():
        acc_ref[...] = jnp.zeros_like(acc_ref)

    t = tgt_ref[...]                                        # (TS, 128)
    valid = jnp.where(t >= 0.0, 1.0, 0.0)                   # 1 real / 0 pad

    lg = [logits_ref[c] for c in range(C)]                  # C x (TS, 128)

    # --- per-sample cross entropy: lse(logits) - logit[target] --------------
    m = lg[0]
    for c in range(1, C):
        m = jnp.maximum(m, lg[c])
    e = [jnp.exp(lg[c] - m) for c in range(C)]              # softmax terms
    s = e[0]
    for c in range(1, C):
        s = s + e[c]
    lse = jnp.log(s) + m                                    # (TS, 128)

    if C == 2:
        t_ce = jnp.where(t == 2.0, 1.0, t)                  # remap 2 -> 1
    else:
        t_ce = t
    tgt_logit = lg[0]
    tgt_exp = e[0]
    for c in range(1, C):
        is_c = (t_ce == float(c))
        tgt_logit = jnp.where(is_c, lg[c], tgt_logit)
        tgt_exp = jnp.where(is_c, e[c], tgt_exp)

    loss = (lse - tgt_logit) * valid                        # raw CE, 0 on pads

    # --- class-weight gather: at = cls_weights[target] (scalar selects) -----
    w0 = clsw_ref[0]
    w1 = clsw_ref[1]
    w2 = clsw_ref[2]
    at = jnp.where(t == 0.0, w0, jnp.where(t == 1.0, w1, w2))

    if focal_scaler is not None:
        # pt = exp(-loss) on valid lanes; reuse the softmax terms (no extra exp).
        pt = tgt_exp / s
        omp = 1.0 - pt
        if isinstance(focal_scaler, int) and 0 <= focal_scaler <= 8:
            f = jnp.ones_like(loss)                         # unrolled, pure VPU
            for _ in range(focal_scaler):
                f = f * omp
        else:
            f = omp ** focal_scaler
        w_loss = at * f * loss                              # loss==0 on pads
    else:
        w_loss = at * loss

    # --- per-class masks ------------------------------------------------------
    m0 = jnp.where(t == 0.0, 1.0, 0.0)
    m1 = jnp.where(t == 1.0, 1.0, 0.0)
    m2 = jnp.where(t == 2.0, 1.0, 0.0)

    # --- accuracy via direct first-argmax comparisons -------------------------
    correct = jnp.zeros_like(t)
    for c in range(C):
        ok = None
        for j in range(C):
            if j == c:
                continue
            cmp = (lg[c] > lg[j]) if j < c else (lg[c] >= lg[j])
            ok = cmp if ok is None else jnp.logical_and(ok, cmp)
        hit = jnp.logical_and(t == float(c), ok)
        correct = jnp.where(hit, 1.0, correct)

    # --- accumulate cross-sublane partial sums into the (16,128) scratch ------
    def _rsum(x):
        return jnp.sum(x, axis=0, keepdims=True)            # (1, 128)

    zero_row = jnp.zeros((1, t.shape[1]), jnp.float32)
    valid_row = _rsum(valid)
    num_rows = [_rsum(w_loss), _rsum(loss * m0), _rsum(loss * m1),
                _rsum(loss * m2), _rsum(100.0 * (valid - correct)),
                zero_row, zero_row, zero_row]
    den_rows = [valid_row, _rsum(m0), _rsum(m1), _rsum(m2), valid_row,
                zero_row, zero_row, zero_row]
    partial = jnp.concatenate(num_rows + den_rows, axis=0)   # (16, 128)
    acc_ref[...] = acc_ref[...] + partial

    # --- finalize: one division, one unmasked (8,128) store -------------------
    @pl.when(s_idx == pl.num_programs(1) - 1)
    def _():
        a = acc_ref[...]
        num_s = jnp.sum(a[0:8, :], axis=1, keepdims=True)    # (8, 1)
        den_s = jnp.sum(a[8:16, :], axis=1, keepdims=True)   # (8, 1)
        # row 4: 100*(n_valid - n_correct)/n_valid == class_error directly.
        # absent classes give 0/0 = NaN (matches torch .mean() over empty mask).
        out_ref[...] = jnp.broadcast_to(num_s / den_s, (8, 128))


# ----------------------------------------------------------------------------
# Wrapper: stage once, one pallas_call for all L layers
# ----------------------------------------------------------------------------
def _run_criterion_kernel(logits_stacked, targets, cls_weights, num_classes,
                          focal_scaler, tile_rows=512):
    """logits_stacked: (L, N, C). Returns (L, 8) f32 scalar results."""
    logits_stacked = jnp.asarray(logits_stacked, jnp.float32)
    targets = jnp.asarray(targets)
    L, N, C = logits_stacked.shape
    lanes = 128

    ns = max(8, ((-(-N // lanes)) + 7) // 8 * 8)             # sublane rows, mult of 8
    tile_rows = min(tile_rows, ns)
    ns = ((ns + tile_rows - 1) // tile_rows) * tile_rows     # multiple of tile_rows
    n_tiles = ns // tile_rows
    Np = ns * lanes

    # fused transpose + pad + reshape; no class-axis padding, no zeros+scatter.
    lg = jnp.transpose(logits_stacked, (0, 2, 1))            # (L, C, N)
    lg = jnp.pad(lg, ((0, 0), (0, 0), (0, Np - N)))          # zero-pad samples
    lg = lg.reshape(L, C, ns, lanes)

    tgt = jnp.pad(targets.astype(jnp.float32), (0, Np - N),
                  constant_values=-1.0)                      # -1 marks padding
    tgt = tgt.reshape(ns, lanes)

    clsw = jnp.zeros((4,), jnp.float32)
    clsw = clsw.at[:cls_weights.shape[0]].set(cls_weights.astype(jnp.float32))

    kernel = functools.partial(_criterion_kernel, num_classes=num_classes,
                               focal_scaler=focal_scaler)

    out = pl.pallas_call(
        kernel,
        out_shape=jax.ShapeDtypeStruct((L, 8, 128), jnp.float32),
        grid_spec=pltpu.PrefetchScalarGridSpec(
            num_scalar_prefetch=0,
            grid=(L, n_tiles),
            in_specs=[
                pl.BlockSpec((None, C, tile_rows, lanes),
                             lambda l, s: (l, 0, s, 0)),
                pl.BlockSpec((tile_rows, lanes), lambda l, s: (s, 0)),
                pl.BlockSpec(memory_space=pltpu.MemorySpace.SMEM),
            ],
            out_specs=pl.BlockSpec((None, 8, 128), lambda l, s: (l, 0, 0)),
            scratch_shapes=[pltpu.VMEM((16, 128), jnp.float32)],
        ),
        compiler_params=pltpu.CompilerParams(
            dimension_semantics=("parallel", "arbitrary")),
    )(lg, tgt, clsw)
    return out[:, :, 0]                                      # (L, 8)


# ----------------------------------------------------------------------------
# SetCriterion (JAX / Pallas version)
# ----------------------------------------------------------------------------
class SetCriterion:
    def __init__(self, num_class, loss, weight_dict, cls_weight,
                 focal_scaler=None):
        assert num_class == 2 or num_class == 3
        self.num_classes = num_class
        self.loss = loss
        self.cls_weights = jnp.asarray(cls_weight, jnp.float32)
        self.focal_scaler = focal_scaler
        self.weight_dict = weight_dict

    def loss_labels(self, outputs, targets, log=True):
        assert 'pred_logits' in outputs
        out = _run_criterion_kernel(outputs['pred_logits'][None], targets,
                                    self.cls_weights, self.num_classes,
                                    self.focal_scaler)
        losses = {'loss_ce': out[0, 0]}
        if log:
            losses.update({'loss_NW': out[0, 1],
                           'loss_preFoG': out[0, 2],
                           'loss_FoG': out[0, 3],
                           'class_error': out[0, 4]})
        return losses

    def get_loss(self, loss, outputs, targets, **kwargs):
        loss_map = {'labels': self.loss_labels}
        assert loss in loss_map, 'loss type error, please check it.'
        return loss_map[loss](outputs, targets, **kwargs)

    def __call__(self, outputs, targets):
        # Fused fast path: main output + all aux layers in a single pallas_call
        # with a grid over (layer, sample tile).
        if list(self.loss) == ['labels'] and 'pred_logits' in outputs:
            aux = outputs.get('aux_outputs', [])
            all_logits = jnp.stack(
                [outputs['pred_logits']] + [a['pred_logits'] for a in aux],
                axis=0)                                      # (L, N, C)
            out = _run_criterion_kernel(all_logits, targets, self.cls_weights,
                                        self.num_classes, self.focal_scaler)
            losses = {'loss_ce': out[0, 0],
                      'loss_NW': out[0, 1],
                      'loss_preFoG': out[0, 2],
                      'loss_FoG': out[0, 3],
                      'class_error': out[0, 4]}
            for i in range(len(aux)):
                losses['loss_ce_{}'.format(i)] = out[i + 1, 0]
            return losses

        # Generic path (mirrors the original control flow).
        losses = {}
        for loss in self.loss:
            losses.update(self.get_loss(loss, outputs, targets))
        if 'aux_outputs' in outputs:
            for i, aux_outputs in enumerate(outputs['aux_outputs']):
                for loss in self.loss:
                    kwargs = {'log': False} if loss == 'labels' else {}
                    l_dict = self.get_loss(loss, aux_outputs, targets, **kwargs)
                    l_dict = {k + '_{}'.format(i): v for k, v in l_dict.items()}
                    losses.update(l_dict)
        return losses


# ----------------------------------------------------------------------------
# Pure-JAX reference (verification only)
# ----------------------------------------------------------------------------
def _ref_loss_labels(logits, targets, cls_w, num_classes, focal):
    t_ce = jnp.where(targets == 2, 1, targets) if num_classes == 2 else targets
    logp = jax.nn.log_softmax(logits.astype(jnp.float32), axis=-1)
    loss = -jnp.take_along_axis(logp, t_ce[:, None], axis=1)[:, 0]
    at = cls_w[targets]
    if focal is not None:
        pt = jnp.exp(-loss)
        w_loss = at * (1.0 - pt) ** focal * loss
    else:
        w_loss = at * loss
    res = {'loss_ce': jnp.mean(w_loss)}
    for c, name in enumerate(['loss_NW', 'loss_preFoG', 'loss_FoG']):
        m = targets == c
        res[name] = jnp.sum(jnp.where(m, loss, 0.0)) / jnp.sum(m)
    acc = jnp.mean((jnp.argmax(logits, axis=1) == targets).astype(jnp.float32))
    res['class_error'] = 100.0 - acc * 100.0
    return res


# ----------------------------------------------------------------------------
if __name__ == "__main__":
    key = jax.random.PRNGKey(0)
    N, C = 16, 3
    k1, k2, k3, k4, k5 = jax.random.split(key, 5)

    logits = jax.random.normal(k1, (N, C), jnp.float32)
    targets = jax.random.randint(k2, (N,), 0, 3)
    # ensure every class is present (per-class means are NaN otherwise,
    # matching the torch reference behavior)
    targets = targets.at[0].set(0).at[1].set(1).at[2].set(2)

    aux_logits = [jax.random.normal(k3, (N, C), jnp.float32),
                  jax.random.normal(k4, (N, C), jnp.float32)]

    cls_weight = jnp.array([1.0, 2.0, 3.0], jnp.float32)
    criterion = SetCriterion(num_class=3, loss=['labels'],
                             weight_dict={'loss_ce': 1.0},
                             cls_weight=cls_weight, focal_scaler=None)

    outputs = {'pred_logits': logits,
               'aux_outputs': [{'pred_logits': a} for a in aux_logits]}

    losses = jax.block_until_ready(criterion(outputs, targets))

    ref = _ref_loss_labels(logits, targets, cls_weight, 3, None)
    for k in ['loss_ce', 'loss_NW', 'loss_preFoG', 'loss_FoG', 'class_error']:
        assert jnp.allclose(losses[k], ref[k], rtol=1e-4, atol=1e-4), (
            k, losses[k], ref[k])
    for i, a in enumerate(aux_logits):
        ref_aux = _ref_loss_labels(a, targets, cls_weight, 3, None)
        assert jnp.allclose(losses['loss_ce_{}'.format(i)],
                            ref_aux['loss_ce'], rtol=1e-4, atol=1e-4)

    # focal-loss variant (integer scaler -> unrolled multiplies in-kernel)
    criterion_f = SetCriterion(num_class=3, loss=['labels'],
                               weight_dict={'loss_ce': 1.0},
                               cls_weight=cls_weight, focal_scaler=2)
    losses_f = jax.block_until_ready(
        criterion_f({'pred_logits': logits}, targets))
    ref_f = _ref_loss_labels(logits, targets, cls_weight, 3, 2)
    assert jnp.allclose(losses_f['loss_ce'], ref_f['loss_ce'],
                        rtol=1e-4, atol=1e-4)

    # 2-class variant (targets still 0/1/2; CE targets remapped 2 -> 1)
    logits2 = jax.random.normal(k5, (N, 2), jnp.float32)
    criterion2 = SetCriterion(num_class=2, loss=['labels'],
                              weight_dict={'loss_ce': 1.0},
                              cls_weight=cls_weight, focal_scaler=None)
    losses2 = jax.block_until_ready(
        criterion2({'pred_logits': logits2}, targets))
    ref2 = _ref_loss_labels(logits2, targets, cls_weight, 2, None)
    for k in ['loss_ce', 'loss_NW', 'loss_preFoG', 'loss_FoG', 'class_error']:
        assert jnp.allclose(losses2[k], ref2[k], rtol=1e-4, atol=1e-4), (
            k, losses2[k], ref2[k])

    print("KERNEL_OK")
</pallas_src>

<mosaic_0001>
module attributes {stable_mosaic.version = 11 : i64} {
  func.func @_criterion_kernel(%arg0: i32, %arg1: i32, %arg2: memref<1x3x8x128xf32, #tpu.memory_space<vmem>>, %arg3: memref<8x128xf32, #tpu.memory_space<vmem>>, %arg4: memref<4xf32, #tpu.memory_space<smem>>, %arg5: memref<1x8x128xf32, #tpu.memory_space<vmem>>, %arg6: memref<16x128xf32, #tpu.memory_space<vmem>>) attributes {dimension_semantics = [#tpu.dimension_semantics<parallel>, #tpu.dimension_semantics<arbitrary>], iteration_bounds = array<i64: 3, 1>, scalar_prefetch = 0 : i64, scratch_operands = 1 : i64, tpu.core_type = #tpu.core_type<tc>, window_params = [{transform_indices = @transform_0, window_bounds = array<i64: 1, 3, 8, 128>}, {transform_indices = @transform_1, window_bounds = array<i64: 8, 128>}, {transform_indices = @transform_2, window_bounds = array<i64: 4>}, {transform_indices = @transform_3, window_bounds = array<i64: 1, 8, 128>}]} {
    %c0_i32 = arith.constant 0 : i32
    %0 = arith.cmpi eq, %arg1, %c0_i32 : i32
    %1 = arith.extui %0 : i1 to i32
    %c0_i32_0 = arith.constant 0 : i32
    %2 = arith.cmpi ne, %1, %c0_i32_0 : i32
    scf.if %2 {
      %cst_54 = arith.constant 0.000000e+00 : f32
      %120 = vector.broadcast %cst_54 : f32 to vector<16x128xf32>
      %c0_55 = arith.constant 0 : index
      %c0_56 = arith.constant 0 : index
      %121 = vector.load %arg6[%c0_55, %c0_56] : memref<16x128xf32, #tpu.memory_space<vmem>>, vector<16x128xf32>
      tpu.vector_store %arg6[%c0_55, %c0_56], %120 {strides = array<i32>} : memref<16x128xf32, #tpu.memory_space<vmem>>, vector<16x128xf32>,
    } else {
    }
    %c0 = arith.constant 0 : index
    %c0_1 = arith.constant 0 : index
    %3 = vector.load %arg3[%c0, %c0_1] : memref<8x128xf32, #tpu.memory_space<vmem>>, vector<8x128xf32>
    %cst = arith.constant 0.000000e+00 : f32
    %4 = vector.broadcast %cst : f32 to vector<8x128xf32>
    %5 = arith.cmpf oge, %3, %4 : vector<8x128xf32>
    %cst_2 = arith.constant 1.000000e+00 : f32
    %cst_3 = arith.constant 0.000000e+00 : f32
    %6 = vector.broadcast %cst_2 : f32 to vector<8x128xf32>
    %7 = vector.broadcast %cst_3 : f32 to vector<8x128xf32>
    %8 = arith.select %5, %6, %7 : vector<8x128xi1>, vector<8x128xf32>
    %c0_4 = arith.constant 0 : index
    %c0_5 = arith.constant 0 : index
    %c0_6 = arith.constant 0 : index
    %c0_7 = arith.constant 0 : index
    %9 = vector.load %arg2[%c0_4, %c0_5, %c0_6, %c0_7] : memref<1x3x8x128xf32, #tpu.memory_space<vmem>>, vector<1x1x8x128xf32>
    %10 = vector.shape_cast %9 : vector<1x1x8x128xf32> to vector<8x128xf32>
    %c0_8 = arith.constant 0 : index
    %c1 = arith.constant 1 : index
    %c0_9 = arith.constant 0 : index
    %c0_10 = arith.constant 0 : index
    %11 = vector.load %arg2[%c0_8, %c1, %c0_9, %c0_10] : memref<1x3x8x128xf32, #tpu.memory_space<vmem>>, vector<1x1x8x128xf32>
    %12 = vector.shape_cast %11 : vector<1x1x8x128xf32> to vector<8x128xf32>
    %c0_11 = arith.constant 0 : index
    %c2 = arith.constant 2 : index
    %c0_12 = arith.constant 0 : index
    %c0_13 = arith.constant 0 : index
    %13 = vector.load %arg2[%c0_11, %c2, %c0_12, %c0_13] : memref<1x3x8x128xf32, #tpu.memory_space<vmem>>, vector<1x1x8x128xf32>
    %14 = vector.shape_cast %13 : vector<1x1x8x128xf32> to vector<8x128xf32>
    %15 = arith.maximumf %10, %12 : vector<8x128xf32>
    %16 = arith.maximumf %15, %14 : vector<8x128xf32>
    %17 = arith.subf %10, %16 : vector<8x128xf32>
    %18 = math.exp %17 : vector<8x128xf32>
    %19 = arith.subf %12, %16 : vector<8x128xf32>
    %20 = math.exp %19 : vector<8x128xf32>
    %21 = arith.subf %14, %16 : vector<8x128xf32>
    %22 = math.exp %21 : vector<8x128xf32>
    %23 = arith.addf %18, %20 : vector<8x128xf32>
    %24 = arith.addf %23, %22 : vector<8x128xf32>
    %25 = math.log %24 : vector<8x128xf32>
    %26 = arith.addf %25, %16 : vector<8x128xf32>
    %cst_14 = arith.constant 1.000000e+00 : f32
    %27 = vector.broadcast %cst_14 : f32 to vector<8x128xf32>
    %28 = arith.cmpf oeq, %3, %27 : vector<8x128xf32>
    %29 = arith.select %28, %12, %10 : vector<8x128xi1>, vector<8x128xf32>
    %cst_15 = arith.constant 2.000000e+00 : f32
    %30 = vector.broadcast %cst_15 : f32 to vector<8x128xf32>
    %31 = arith.cmpf oeq, %3, %30 : vector<8x128xf32>
    %32 = arith.select %31, %14, %29 : vector<8x128xi1>, vector<8x128xf32>
    %33 = arith.subf %26, %32 : vector<8x128xf32>
    %34 = arith.mulf %33, %8 : vector<8x128xf32>
    %c0_16 = arith.constant 0 : index
    %35 = memref.load %arg4[%c0_16] : memref<4xf32, #tpu.memory_space<smem>>
    %c1_17 = arith.constant 1 : index
    %36 = memref.load %arg4[%c1_17] : memref<4xf32, #tpu.memory_space<smem>>
    %c2_18 = arith.constant 2 : index
    %37 = memref.load %arg4[%c2_18] : memref<4xf32, #tpu.memory_space<smem>>
    %cst_19 = arith.constant 0.000000e+00 : f32
    %38 = vector.broadcast %cst_19 : f32 to vector<8x128xf32>
    %39 = arith.cmpf oeq, %3, %38 : vector<8x128xf32>
    %cst_20 = arith.constant 1.000000e+00 : f32
    %40 = vector.broadcast %cst_20 : f32 to vector<8x128xf32>
    %41 = arith.cmpf oeq, %3, %40 : vector<8x128xf32>
    %42 = vector.broadcast %36 : f32 to vector<8x128xf32>
    %43 = vector.broadcast %37 : f32 to vector<8x128xf32>
    %44 = arith.select %41, %42, %43 : vector<8x128xi1>, vector<8x128xf32>
    %45 = vector.broadcast %35 : f32 to vector<8x128xf32>
    %46 = arith.select %39, %45, %44 : vector<8x128xi1>, vector<8x128xf32>
    %47 = arith.mulf %46, %34 : vector<8x128xf32>
    %cst_21 = arith.constant 0.000000e+00 : f32
    %48 = vector.broadcast %cst_21 : f32 to vector<8x128xf32>
    %49 = arith.cmpf oeq, %3, %48 : vector<8x128xf32>
    %cst_22 = arith.constant 1.000000e+00 : f32
    %cst_23 = arith.constant 0.000000e+00 : f32
    %50 = vector.broadcast %cst_22 : f32 to vector<8x128xf32>
    %51 = vector.broadcast %cst_23 : f32 to vector<8x128xf32>
    %52 = arith.select %49, %50, %51 : vector<8x128xi1>, vector<8x128xf32>
    %cst_24 = arith.constant 1.000000e+00 : f32
    %53 = vector.broadcast %cst_24 : f32 to vector<8x128xf32>
    %54 = arith.cmpf oeq, %3, %53 : vector<8x128xf32>
    %cst_25 = arith.constant 1.000000e+00 : f32
    %cst_26 = arith.constant 0.000000e+00 : f32
    %55 = vector.broadcast %cst_25 : f32 to vector<8x128xf32>
    %56 = vector.broadcast %cst_26 : f32 to vector<8x128xf32>
    %57 = arith.select %54, %55, %56 : vector<8x128xi1>, vector<8x128xf32>
    %cst_27 = arith.constant 2.000000e+00 : f32
    %58 = vector.broadcast %cst_27 : f32 to vector<8x128xf32>
    %59 = arith.cmpf oeq, %3, %58 : vector<8x128xf32>
    %cst_28 = arith.constant 1.000000e+00 : f32
    %cst_29 = arith.constant 0.000000e+00 : f32
    %60 = vector.broadcast %cst_28 : f32 to vector<8x128xf32>
    %61 = vector.broadcast %cst_29 : f32 to vector<8x128xf32>
    %62 = arith.select %59, %60, %61 : vector<8x128xi1>, vector<8x128xf32>
    %cst_30 = arith.constant 0.000000e+00 : f32
    %63 = vector.broadcast %cst_30 : f32 to vector<8x128xf32>
    %64 = arith.cmpf oge, %10, %12 : vector<8x128xf32>
    %65 = arith.cmpf oge, %10, %14 : vector<8x128xf32>
    %66 = arith.andi %64, %65 : vector<8x128xi1>
    %cst_31 = arith.constant 0.000000e+00 : f32
    %67 = vector.broadcast %cst_31 : f32 to vector<8x128xf32>
    %68 = arith.cmpf oeq, %3, %67 : vector<8x128xf32>
    %69 = arith.andi %68, %66 : vector<8x128xi1>
    %cst_32 = arith.constant 1.000000e+00 : f32
    %70 = vector.broadcast %cst_32 : f32 to vector<8x128xf32>
    %71 = arith.select %69, %70, %63 : vector<8x128xi1>, vector<8x128xf32>
    %72 = arith.cmpf ogt, %12, %10 : vector<8x128xf32>
    %73 = arith.cmpf oge, %12, %14 : vector<8x128xf32>
    %74 = arith.andi %72, %73 : vector<8x128xi1>
    %cst_33 = arith.constant 1.000000e+00 : f32
    %75 = vector.broadcast %cst_33 : f32 to vector<8x128xf32>
    %76 = arith.cmpf oeq, %3, %75 : vector<8x128xf32>
    %77 = arith.andi %76, %74 : vector<8x128xi1>
    %cst_34 = arith.constant 1.000000e+00 : f32
    %78 = vector.broadcast %cst_34 : f32 to vector<8x128xf32>
    %79 = arith.select %77, %78, %71 : vector<8x128xi1>, vector<8x128xf32>
    %80 = arith.cmpf ogt, %14, %10 : vector<8x128xf32>
    %81 = arith.cmpf ogt, %14, %12 : vector<8x128xf32>
    %82 = arith.andi %80, %81 : vector<8x128xi1>
    %cst_35 = arith.constant 2.000000e+00 : f32
    %83 = vector.broadcast %cst_35 : f32 to vector<8x128xf32>
    %84 = arith.cmpf oeq, %3, %83 : vector<8x128xf32>
    %85 = arith.andi %84, %82 : vector<8x128xi1>
    %cst_36 = arith.constant 1.000000e+00 : f32
    %86 = vector.broadcast %cst_36 : f32 to vector<8x128xf32>
    %87 = arith.select %85, %86, %79 : vector<8x128xi1>, vector<8x128xf32>
    %cst_37 = arith.constant 0.000000e+00 : f32
    %88 = vector.broadcast %cst_37 : f32 to vector<1x128xf32>
    %cst_38 = arith.constant dense<0.000000e+00> : vector<128xf32>
    %89 = vector.multi_reduction <add>, %8, %cst_38 [0] : vector<8x128xf32> to vector<128xf32>
    %90 = vector.shape_cast %89 : vector<128xf32> to vector<1x128xf32>
    %cst_39 = arith.constant dense<0.000000e+00> : vector<128xf32>
    %91 = vector.multi_reduction <add>, %47, %cst_39 [0] : vector<8x128xf32> to vector<128xf32>
    %92 = vector.shape_cast %91 : vector<128xf32> to vector<1x128xf32>
    %93 = arith.mulf %34, %52 : vector<8x128xf32>
    %cst_40 = arith.constant dense<0.000000e+00> : vector<128xf32>
    %94 = vector.multi_reduction <add>, %93, %cst_40 [0] : vector<8x128xf32> to vector<128xf32>
    %95 = vector.shape_cast %94 : vector<128xf32> to vector<1x128xf32>
    %96 = arith.mulf %34, %57 : vector<8x128xf32>
    %cst_41 = arith.constant dense<0.000000e+00> : vector<128xf32>
    %97 = vector.multi_reduction <add>, %96, %cst_41 [0] : vector<8x128xf32> to vector<128xf32>
    %98 = vector.shape_cast %97 : vector<128xf32> to vector<1x128xf32>
    %99 = arith.mulf %34, %62 : vector<8x128xf32>
    %cst_42 = arith.constant dense<0.000000e+00> : vector<128xf32>
    %100 = vector.multi_reduction <add>, %99, %cst_42 [0] : vector<8x128xf32> to vector<128xf32>
    %101 = vector.shape_cast %100 : vector<128xf32> to vector<1x128xf32>
    %102 = arith.subf %8, %87 : vector<8x128xf32>
    %cst_43 = arith.constant 1.000000e+02 : f32
    %103 = vector.broadcast %cst_43 : f32 to vector<8x128xf32>
    %104 = arith.mulf %103, %102 : vector<8x128xf32>
    %cst_44 = arith.constant dense<0.000000e+00> : vector<128xf32>
    %105 = vector.multi_reduction <add>, %104, %cst_44 [0] : vector<8x128xf32> to vector<128xf32>
    %106 = vector.shape_cast %105 : vector<128xf32> to vector<1x128xf32>
    %cst_45 = arith.constant dense<0.000000e+00> : vector<128xf32>
    %107 = vector.multi_reduction <add>, %52, %cst_45 [0] : vector<8x128xf32> to vector<128xf32>
    %108 = vector.shape_cast %107 : vector<128xf32> to vector<1x128xf32>
    %cst_46 = arith.constant dense<0.000000e+00> : vector<128xf32>
    %109 = vector.multi_reduction <add>, %57, %cst_46 [0] : vector<8x128xf32> to vector<128xf32>
    %110 = vector.shape_cast %109 : vector<128xf32> to vector<1x128xf32>
    %cst_47 = arith.constant dense<0.000000e+00> : vector<128xf32>
    %111 = vector.multi_reduction <add>, %62, %cst_47 [0] : vector<8x128xf32> to vector<128xf32>
    %112 = vector.shape_cast %111 : vector<128xf32> to vector<1x128xf32>
    %113 = tpu.concatenate %92, %95, %98, %101, %106, %88, %88, %88, %90, %108, %110, %112, %90, %88, %88, %88 in 0 : vector<1x128xf32>, vector<1x128xf32>, vector<1x128xf32>, vector<1x128xf32>, vector<1x128xf32>, vector<1x128xf32>, vector<1x128xf32>, vector<1x128xf32>, vector<1x128xf32>, vector<1x128xf32>, vector<1x128xf32>, vector<1x128xf32>, vector<1x128xf32>, vector<1x128xf32>, vector<1x128xf32>, vector<1x128xf32> -> vector<16x128xf32>
    %c0_48 = arith.constant 0 : index
    %c0_49 = arith.constant 0 : index
    %114 = vector.load %arg6[%c0_48, %c0_49] : memref<16x128xf32, #tpu.memory_space<vmem>>, vector<16x128xf32>
    %115 = arith.addf %114, %113 : vector<16x128xf32>
    %c0_50 = arith.constant 0 : index
    %c0_51 = arith.constant 0 : index
    %116 = vector.load %arg6[%c0_50, %c0_51] : memref<16x128xf32, #tpu.memory_space<vmem>>, vector<16x128xf32>
    tpu.vector_store %arg6[%c0_50, %c0_51], %115 {strides = array<i32>} : memref<16x128xf32, #tpu.memory_space<vmem>>, vector<16x128xf32>,
    %c0_i32_52 = arith.constant 0 : i32
    %117 = arith.cmpi eq, %arg1, %c0_i32_52 : i32
    %118 = arith.extui %117 : i1 to i32
    %c0_i32_53 = arith.constant 0 : i32
    %119 = arith.cmpi ne, %118, %c0_i32_53 : i32
    scf.if %119 {
      %c0_54 = arith.constant 0 : index
      %c0_55 = arith.constant 0 : index
      %120 = vector.load %arg6[%c0_54, %c0_55] : memref<16x128xf32, #tpu.memory_space<vmem>>, vector<16x128xf32>
      %121 = vector.extract_strided_slice %120 {offsets = [0, 0], sizes = [8, 128], strides = [1, 1]} : vector<16x128xf32> to vector<8x128xf32>
      %cst_56 = arith.constant dense<0.000000e+00> : vector<8xf32>
      %122 = vector.multi_reduction <add>, %121, %cst_56 [1] : vector<8x128xf32> to vector<8xf32>
      %123 = vector.shape_cast %122 : vector<8xf32> to vector<8x1xf32>
      %124 = vector.extract_strided_slice %120 {offsets = [8, 0], sizes = [8, 128], strides = [1, 1]} : vector<16x128xf32> to vector<8x128xf32>
      %cst_57 = arith.constant dense<0.000000e+00> : vector<8xf32>
      %125 = vector.multi_reduction <add>, %124, %cst_57 [1] : vector<8x128xf32> to vector<8xf32>
      %126 = vector.shape_cast %125 : vector<8xf32> to vector<8x1xf32>
      %127 = arith.divf %123, %126 : vector<8x1xf32>
      %128 = vector.shape_cast %127 : vector<8x1xf32> to vector<8x1xf32>
      %129 = vector.broadcast %128 : vector<8x1xf32> to vector<8x128xf32>
      %c0_58 = arith.constant 0 : index
      %c0_59 = arith.constant 0 : index
      %c0_60 = arith.constant 0 : index
      %130 = vector.load %arg5[%c0_58, %c0_59, %c0_60] : memref<1x8x128xf32, #tpu.memory_space<vmem>>, vector<1x8x128xf32>
      %131 = vector.shape_cast %130 : vector<1x8x128xf32> to vector<8x128xf32>
      %132 = vector.shape_cast %129 : vector<8x128xf32> to vector<1x8x128xf32>
      tpu.vector_store %arg5[%c0_58, %c0_59, %c0_60], %132 {strides = array<i32>} : memref<1x8x128xf32, #tpu.memory_space<vmem>>, vector<1x8x128xf32>,
    } else {
    }
    return
  }
  func.func @transform_0(%arg0: i32, %arg1: i32) -> (i32, i32, i32, i32) {
    %c0_i32 = arith.constant 0 : i32
    %c0_i32_0 = arith.constant 0 : i32
    %c0_i32_1 = arith.constant 0 : i32
    return %arg0, %c0_i32, %arg1, %c0_i32_0 : i32, i32, i32, i32
  }
  func.func @transform_1(%arg0: i32, %arg1: i32) -> (i32, i32) {
    %c0_i32 = arith.constant 0 : i32
    %c0_i32_0 = arith.constant 0 : i32
    return %arg1, %c0_i32 : i32, i32
  }
  func.func @transform_2(%arg0: i32, %arg1: i32) -> i32 {
    %c0_i32 = arith.constant 0 : i32
    %c0_i32_0 = arith.constant 0 : i32
    return %c0_i32 : i32
  }
  func.func @transform_3(%arg0: i32, %arg1: i32) -> (i32, i32, i32) {
    %c0_i32 = arith.constant 0 : i32
    %c0_i32_0 = arith.constant 0 : i32
    %c0_i32_1 = arith.constant 0 : i32
    return %arg0, %c0_i32, %c0_i32_0 : i32, i32, i32
  }
}

</mosaic_0001>

<llo_original>
// kernel: tpu_custom_call.1
$region0: #{tpu_custom_call.1}
  #allocation0 [shape = 'u32[]', space=smem, size = 0x4, offset = 0x4, fixed_abs, tag = 'smem constant byte address 0x4 - core index']
  #allocation1 [shape = 'u32[144,128]{1,0:T(1,128)}', space=vmem, size = 0x12000, scoped, tag = 'internal scratch']
  #allocation2 [shape = 'f32[16,128]{1,0:T(8,128)}', space=vmem, size = 0x2000, scoped, tag = 'scratch operand']
  %s0 = inlined_call_operand.hbm [shape: f32[3,3,8,128], index: 0, kind: input, shape index: {}]
  %s1 = inlined_call_operand.hbm [shape: f32[8,128], index: 1, kind: input, shape index: {}]
  %s2 = inlined_call_operand.vmem [shape: f32[4], index: 2, kind: input, shape index: {}]
  %s3 = inlined_call_operand.hbm [shape: f32[3,8,128], index: 3, kind: output, shape index: {}]
  %s4 = sld [smem:[#allocation0]]
  $region65: #{tpu_custom_call.1} parent=0
    _
  %s6 = ssub.s32 1, %s4
  %s7 = scalar_select 0, %s6, %s4
  $region1: #{tpu_custom_call.1} parent=0
    #allocation3 [shape = 'u8[24576]{0}', space=vmem, size = 0x6000, scoped, tag = 'input window, operand 0']
    #allocation4 [shape = 's32[2]{0}', space=sflag, size = 0x8, scoped, tag = 'scoped memory for tpu_custom_call.1']
    #allocation5 [shape = 's32[2]{0}', space=sflag, size = 0x8, scoped, tag = 'scoped memory for tpu_custom_call.1']
    #allocation6 [shape = 's32[2]{0}', space=sflag, size = 0x8, scoped, tag = 'scoped memory for tpu_custom_call.1']
    #allocation7 [shape = 'u8[4096]{0}', space=vmem, size = 0x1000, scoped, tag = 'input window, operand 1, single buffered']
    #allocation8 [shape = 's32[1]{0}', space=sflag, size = 0x4, scoped, tag = 'scoped memory for tpu_custom_call.1']
    #allocation9 [shape = 'u8[512]{0}', space=smem, size = 0x200, scoped, tag = 'input window, operand 2, single buffered']
    #allocation10 [shape = 'u8[8192]{0}', space=vmem, size = 0x2000, scoped, tag = 'output window, operand 0']
    %8 = vsyncpa [#allocation4], 0
    %s9 = scalar_lea.sflag [#allocation4], 1
    %10 = vsyncpa %s9, 0
    %11 = vsyncpa [#allocation8], 0
    %12 = vsyncpa [#allocation6], 0
    %13 = vsyncpa [#allocation5], 0
    %s14 = scalar_lea.sflag [#allocation5], 1
    %15 = vsyncpa %s14, 0
    loop: start=0, step=1, limit=5
    $region2: #{tpu_custom_call.1} parent=1 // loop_pre_header
      _
    $region3: #{tpu_custom_call.1} parent=1 // loop_header
      %s17 = sphi 0, %s21
      %p18 = scmp.ge.s32.totalorder %s17, 5
      %s24 = sphi 0, %s36
      %s25 = sphi 0, %s32
      %s26 = sphi 0, %s24
      %s27 = sphi 0, %s25
      %s28 = sphi 0, %s26
      %s29 = sphi 0, %s27
      %s41 = sphi 0, %s43
      %s44 = sphi 0, %s41
      %s45 = sphi 0, %s44
      %s61 = sphi 0, %s45
      %s67 = sphi 0, %s69
      %s70 = sphi 0, %s67
      %s71 = sphi 0, %s70
      %s87 = sphi 0, %s71
      %s91 = sphi 0, %s91
      %s93 = sphi 0, %s91
      %s94 = sphi 0, %s93
      %s108 = sphi 0, %s94
      %s114 = sphi 0, %s116
      %s117 = sphi 0, %s114
      %s118 = sphi 0, %s117
      %s134 = sphi 0, %s118
    $region4: #{tpu_custom_call.1} parent=1 // loop_header_branch
      %20 = sbr.rel (%p18) target = $region8
    $region5: #{tpu_custom_call.1} parent=1 // loop_body
      %s22 = ssub.s32 %s17, 1
      %s23 = ssub.s32 %s17, 2
      %s30 = sadd.s32 1, %s25
      %p31 = scmp.ge.s32.totalorder %s30, 1
      %s32 = scalar_select %p31, 0, %s30
      %s33 = sadd.s32 1, %s24
      %s34 = scalar_select %p31, %s33, %s24
      %p35 = scmp.ge.s32.totalorder %s34, 3
      %s36 = scalar_select %p35, 0, %s34
      %s37 = ssub.s32 %s24, %s36
      %s38 = ssub.s32 %s25, %s32
      %s39 = sor.u32 %s37, %s38
      %p40 = scmp.eq.s32.totalorder %s39, 0
      %s42 = sadd.s32 %s41, 1
      %s43 = scalar_select %p40, %s41, %s42
      %p46 = pneg %p40
      %p47 = scmp.eq.s32.totalorder %s17, 2
      %p48 = por %p46, %p47
      %p49 = scmp.ne.s32.totalorder %s41, %s44
      %p50 = scmp.eq.s32.totalorder %s17, 0
      %p51 = por %p49, %p50
      %p52 = scmp.ne.s32.totalorder %s41, %s44
      %p53 = scmp.eq.s32.totalorder %s22, 2
      %p54 = por %p52, %p53
      %p55 = scmp.ne.s32.totalorder %s44, %s45
      %p56 = scmp.eq.s32.totalorder %s22, 0
      %p57 = por %p55, %p56
      %p58 = scmp.ne.s32.totalorder %s44, %s45
      %p59 = scmp.eq.s32.totalorder %s23, 2
      %p60 = por %p58, %p59
      %p62 = scmp.ne.s32.totalorder %s45, %s61
      %p63 = scmp.eq.s32.totalorder %s23, 0
      %p64 = por %p62, %p63
      %s65 = ssub.s32 %s25, %s32
      %p66 = scmp.eq.s32.totalorder %s65, 0
      %s68 = sadd.s32 %s67, 1
      %s69 = scalar_select %p66, %s67, %s68
      %p72 = pneg %p66
      %p73 = scmp.eq.s32.totalorder %s17, 2
      %p74 = por %p72, %p73
      %p75 = scmp.ne.s32.totalorder %s67, %s70
      %p76 = scmp.eq.s32.totalorder %s17, 0
      %p77 = por %p75, %p76
      %p78 = scmp.ne.s32.totalorder %s67, %s70
      %p79 = scmp.eq.s32.totalorder %s22, 2
      %p80 = por %p78, %p79
      %p81 = scmp.ne.s32.totalorder %s70, %s71
      %p82 = scmp.eq.s32.totalorder %s22, 0
      %p83 = por %p81, %p82
      %p84 = scmp.ne.s32.totalorder %s70, %s71
      %p85 = scmp.eq.s32.totalorder %s23, 2
      %p86 = por %p84, %p85
      %p88 = scmp.ne.s32.totalorder %s71, %s87
      %p89 = scmp.eq.s32.totalorder %s23, 0
      %p90 = por %p88, %p89
      %s92 = sadd.s32 %s91, 1
      %p95 = scmp.eq.s32.totalorder %s17, 2
      %p96 = scmp.ne.s32.totalorder %s91, %s93
      %p97 = scmp.eq.s32.totalorder %s17, 0
      %p98 = por %p96, %p97
      %p99 = scmp.ne.s32.totalorder %s91, %s93
      %p100 = scmp.eq.s32.totalorder %s22, 2
      %p101 = por %p99, %p100
      %p102 = scmp.ne.s32.totalorder %s93, %s94
      %p103 = scmp.eq.s32.totalorder %s22, 0
      %p104 = por %p102, %p103
      %p105 = scmp.ne.s32.totalorder %s93, %s94
      %p106 = scmp.eq.s32.totalorder %s23, 2
      %p107 = por %p105, %p106
      %p109 = scmp.ne.s32.totalorder %s94, %s108
      %p110 = scmp.eq.s32.totalorder %s23, 0
      %p111 = por %p109, %p110
      %s112 = ssub.s32 %s24, %s36
      %p113 = scmp.eq.s32.totalorder %s112, 0
      %s115 = sadd.s32 %s114, 1
      %s116 = scalar_select %p113, %s114, %s115
      %p119 = pneg %p113
      %p120 = scmp.eq.s32.totalorder %s17, 2
      %p121 = por %p119, %p120
      %p122 = scmp.ne.s32.totalorder %s114, %s117
      %p123 = scmp.eq.s32.totalorder %s17, 0
      %p124 = por %p122, %p123
      %p125 = scmp.ne.s32.totalorder %s114, %s117
      %p126 = scmp.eq.s32.totalorder %s22, 2
      %p127 = por %p125, %p126
      %p128 = scmp.ne.s32.totalorder %s117, %s118
      %p129 = scmp.eq.s32.totalorder %s22, 0
      %p130 = por %p128, %p129
      %p131 = scmp.ne.s32.totalorder %s117, %s118
      %p132 = scmp.eq.s32.totalorder %s23, 2
      %p133 = por %p131, %p132
      %p135 = scmp.ne.s32.totalorder %s118, %s134
      %p136 = scmp.eq.s32.totalorder %s23, 0
      %p137 = por %p135, %p136
      %p138 = scmp.le.s32.totalorder 1, %s17
      %p139 = scmp.lt.s32.totalorder %s17, 4
      %p140 = pnand %p138, %p139
      %p141 = pneg %p140
      // Predicated region
      $region9: #{tpu_custom_call.1} parent=5 // pred_check
        _
      $region10: #{tpu_custom_call.1} parent=5 // pred_check_branch
        %143 = sbr.rel (%p140) target = $region12
      $region11: #{tpu_custom_call.1} parent=5 // pred_region
        %s144 = ssub.s32 %s17, 1
        // Predicated region
        $region13: #{tpu_custom_call.1} parent=11 // pred_check
          %p145 = pneg %p83
        $region14: #{tpu_custom_call.1} parent=11 // pred_check_branch
          %147 = sbr.rel (%p145) target = $region16
        $region15: #{tpu_custom_call.1} parent=11 // pred_region
          %s149 = ssub.s32 128, 128
          %150 = vsyncadd [#allocation8], %s149
          %s151 = smul.addr %s27, 128
          %s152 = scalar_lea.hbm %s1, %s151
          %s154 = sshll.u32 [#allocation7], 4
          %s155 = int_to_ptr.vmem [resolvable:$true] %s154
          %157 = dma.hbm_to_vmem [thread:$0]  %s152, 128, %s155, [#allocation8]
        $region16: #{tpu_custom_call.1} parent=11 // pred_fallthru
          _
        // Predicated region
        $region17: #{tpu_custom_call.1} parent=11 // pred_check
          %p158 = pneg %p104
        $region18: #{tpu_custom_call.1} parent=11 // pred_check_branch
          %160 = sbr.rel (%p158) target = $region20
        $region19: #{tpu_custom_call.1} parent=11 // pred_region
          %s162 = ssub.s32 16, 16
          %163 = vsyncadd [#allocation6], %s162
          %s165 = sshll.u32 %s2, 4
          %s166 = int_to_ptr.vmem [resolvable:$true] %s165
          %168 = dma.vmem_to_smem %s166, 16, [#allocation9], [#allocation6]
        $region20: #{tpu_custom_call.1} parent=11 // pred_fallthru
          _
      $region12: #{tpu_custom_call.1} parent=5 // pred_fallthru
        _
      %p169 = scmp.lt.s32.totalorder %s17, 3
      // Predicated region
      $region21: #{tpu_custom_call.1} parent=5 // pred_check
        %p170 = pneg %p169
      $region22: #{tpu_custom_call.1} parent=5 // pred_check_branch
        %172 = sbr.rel (%p170) target = $region24
      $region23: #{tpu_custom_call.1} parent=5 // pred_region
        // Predicated region
        $region25: #{tpu_custom_call.1} parent=23 // pred_check
          %p173 = pneg %p51
        $region26: #{tpu_custom_call.1} parent=23 // pred_check_branch
          %175 = sbr.rel (%p173) target = $region28
        $region27: #{tpu_custom_call.1} parent=23 // pred_region
          %s176 = sand.u32 %s41, 1
          %s177 = scalar_lea.sflag [#allocation4], %s176
          %s178 = sand.u32 %s41, 1
          %s179 = smul.addr %s178, 24
          %s180 = scalar_lea.vmem [#allocation3], %s179
          %s182 = ssub.s32 384, 384
          %183 = vsyncadd %s177, %s182
          %s184 = smul.addr %s24, 3
          %s185 = sadd.s32 %s25, %s184
          %s186 = smul.addr %s185, 128
          %s187 = scalar_lea.hbm %s0, %s186
          %s188 = sshll.u32 %s180, 4
          %s189 = int_to_ptr.vmem [resolvable:$true] %s188
          %194 = dma.hbm_to_vmem [thread:$0]  %s187, 384, %s189, %s177, 128, 128, 8
        $region28: #{tpu_custom_call.1} parent=23 // pred_fallthru
          _
      $region24: #{tpu_custom_call.1} parent=5 // pred_fallthru
        _
      %p195 = scmp.le.s32.totalorder 1, %s17
      %p196 = scmp.lt.s32.totalorder %s17, 4
      %p197 = pnand %p195, %p196
      %p198 = pneg %p197
      // Predicated region
      $region29: #{tpu_custom_call.1} parent=5 // pred_check
        _
      $region30: #{tpu_custom_call.1} parent=5 // pred_check_branch
        %200 = sbr.rel (%p197) target = $region32
      $region31: #{tpu_custom_call.1} parent=5 // pred_region
        %s201 = ssub.s32 %s17, 1
        %s202 = sand.u32 %s44, 1
        %s203 = scalar_lea.sflag [#allocation4], %s202
        %s204 = sand.u32 %s44, 1
        %s205 = smul.addr %s204, 24
        %s206 = scalar_lea.vmem [#allocation3], %s205
        // Predicated region
        $region33: #{tpu_custom_call.1} parent=31 // pred_check
          %p207 = pneg %p57
        $region34: #{tpu_custom_call.1} parent=31 // pred_check_branch
          %209 = sbr.rel (%p207) target = $region36
        $region35: #{tpu_custom_call.1} parent=31 // pred_region
          %210 = dma.done %s203, 384
        $region36: #{tpu_custom_call.1} parent=31 // pred_fallthru
          _
        // Predicated region
        $region37: #{tpu_custom_call.1} parent=31 // pred_check
          %p211 = pneg %p83
        $region38: #{tpu_custom_call.1} parent=31 // pred_check_branch
          %213 = sbr.rel (%p211) target = $region40
        $region39: #{tpu_custom_call.1} parent=31 // pred_region
          %214 = dma.done [#allocation8], 128
        $region40: #{tpu_custom_call.1} parent=31 // pred_fallthru
          _
        // Predicated region
        $region41: #{tpu_custom_call.1} parent=31 // pred_check
          %p215 = pneg %p104
        $region42: #{tpu_custom_call.1} parent=31 // pred_check_branch
          %217 = sbr.rel (%p215) target = $region44
        $region43: #{tpu_custom_call.1} parent=31 // pred_region
          %218 = dma.done [#allocation6], 16
        $region44: #{tpu_custom_call.1} parent=31 // pred_fallthru
          _
        %219 = sfence
        %s220 = sand.u32 %s44, 1
        %s221 = scalar_lea.sflag [#allocation4], %s220
        %s222 = sand.u32 %s44, 1
        %s223 = smul.addr %s222, 24
        %s224 = scalar_lea.vmem [#allocation3], %s223
        %p225 = pneg %p57
        %p226 = pneg %p54
        %p227 = pneg %p83
        %p228 = pneg %p80
        %p229 = pneg %p104
        %p230 = pneg %p101
        %p231 = pneg %p130
        %p232 = pneg %p127
        %s233 = sand.u32 %s117, 1
        %s234 = scalar_lea.sflag [#allocation5], %s233
        %s235 = sand.u32 %s117, 1
        %s236 = smul.addr %s235, 8
        %s237 = scalar_lea.vmem [#allocation10], %s236
        %p238 = scmp.eq.s32.totalorder %s27, 0
        // Predicated region
        $region45: #{tpu_custom_call.1} parent=31 // pred_check
          %p239 = pneg %p238
        $region46: #{tpu_custom_call.1} parent=31 // pred_check_branch
          %241 = sbr.rel (%p239) target = $region48
        $region47: #{tpu_custom_call.1} parent=31 // pred_region
          %242 = vst [vmem:[#allocation2] sm:$0xff] 0.0
          %243 = vst [vmem:[#allocation2 + $0x8] sm:$0xff] 0.0
        $region48: #{tpu_custom_call.1} parent=31 // pred_fallthru
          _
        %v244 = vld [vmem:[#allocation7] sm:$0xff]
        %vm245 = vcmp.ge.f32.partialorder %v244, 0.0
        %v246 = vsel %vm245, 1.0, 0.0
        %v247 = vld [vmem:[%s206] sm:$0xff]
        %s248 = scalar_lea.vmem %s206, 8 [#allocation3]
        %v249 = vld [vmem:[%s248] sm:$0xff]
        %s250 = scalar_lea.vmem %s206, 16 [#allocation3]
        %v251 = vld [vmem:[%s250] sm:$0xff]
        %v252 = vmax.f32 %v247, %v249
        %v253 = vmax.f32 %v252, %v251
        %v254 = vsub.f32 %v247, %v253
        %v255 = vmul.f32 %v254, 1.442695
        %v256 = vpow.pop %v255
        %v257 = vsub.f32 %v249, %v253
        %v258 = vmul.f32 %v257, 1.442695
        %v259 = vpow.pop %v258
        %v260 = vsub.f32 %v251, %v253
        %v261 = vmul.f32 %v260, 1.442695
        %v262 = vpow.pop %v261
        %v263 = vadd.f32 %v256, %v259
        %v264 = vadd.f32 %v263, %v262
        %v265 = vlog2.pop %v264
        %v266 = vmul.f32 %v265, 0.6931472
        %v267 = vadd.f32 %v266, %v253
        %vm268 = vcmp.eq.f32.partialorder %v244, 1.0
        %v269 = vsel %vm268, %v249, %v247
        %vm270 = vcmp.eq.f32.partialorder %v244, 2.0
        %v271 = vsel %vm270, %v251, %v269
        %v272 = vsub.f32 %v267, %v271
        %v273 = vmul.f32 %v272, %v246
        %s274 = sld [smem:[#allocation9]]
        %s275 = sld [smem:[#allocation9 + $0x1]]
        %s276 = sld [smem:[#allocation9 + $0x2]]
        %vm277 = vcmp.eq.f32.partialorder %v244, 0.0
        %v278 = vstv %s275
        %v279 = vstv %s276
        %v280 = vsel %vm268, %v278, %v279
        %v281 = vstv %s274
        %v282 = vsel %vm277, %v281, %v280
        %v283 = vmul.f32 %v282, %v273
        %v284 = vsel %vm277, 1.0, 0.0
        %v285 = vsel %vm268, 1.0, 0.0
        %v286 = vsel %vm270, 1.0, 0.0
        %vm287 = vcmp.ge.f32.partialorder %v247, %v249
        %vm288 = vcmp.ge.f32.partialorder %v247, %v251
        %vm289 = vmand %vm287, %vm288
        %vm290 = vmand %vm277, %vm289
        %v291 = vsel %vm290, 1.0, 0.0
        %vm292 = vcmp.gt.f32.partialorder %v249, %v247
        %vm293 = vcmp.ge.f32.partialorder %v249, %v251
        %vm294 = vmand %vm292, %vm293
        %vm295 = vmand %vm268, %vm294
        %v296 = vsel %vm295, 1.0, %v291
        %vm297 = vcmp.gt.f32.partialorder %v251, %v247
        %vm298 = vcmp.gt.f32.partialorder %v251, %v249
        %vm299 = vmand %vm297, %vm298
        %vm300 = vmand %vm270, %vm299
        %v301 = vsel %vm300, 1.0, %v296
        %v302 = vrot.slane %v246, 4
        %v303 = vadd.f32 %v246, %v302
        %v304 = vrot.slane %v303, 2
        %v305 = vadd.f32 %v303, %v304
        %v306 = vrot.slane %v305, 1
        %v307 = vadd.f32 %v305, %v306
        %v308 = vrot.slane %v283, 4
        %v309 = vadd.f32 %v283, %v308
        %v310 = vrot.slane %v309, 2
        %v311 = vadd.f32 %v309, %v310
        %v312 = vrot.slane %v311, 1
        %v313 = vadd.f32 %v311, %v312
        %v314 = vmul.f32 %v273, %v284
        %v315 = vrot.slane %v314, 4
        %v316 = vadd.f32 %v314, %v315
        %v317 = vrot.slane %v316, 2
        %v318 = vadd.f32 %v316, %v317
        %v319 = vrot.slane %v318, 1
        %v320 = vadd.f32 %v318, %v319
        %v321 = vmul.f32 %v273, %v285
        %v322 = vrot.slane %v321, 4
        %v323 = vadd.f32 %v321, %v322
        %v324 = vrot.slane %v323, 2
        %v325 = vadd.f32 %v323, %v324
        %v326 = vrot.slane %v325, 1
        %v327 = vadd.f32 %v325, %v326
        %v328 = vmul.f32 %v273, %v286
        %v329 = vrot.slane %v328, 4
        %v330 = vadd.f32 %v328, %v329
        %v331 = vrot.slane %v330, 2
        %v332 = vadd.f32 %v330, %v331
        %v333 = vrot.slane %v332, 1
        %v334 = vadd.f32 %v332, %v333
        %v335 = vsub.f32 %v246, %v301
        %v336 = vmul.f32 %v335, 100.0
        %v337 = vrot.slane %v336, 4
        %v338 = vadd.f32 %v336, %v337
        %v339 = vrot.slane %v338, 2
        %v340 = vadd.f32 %v338, %v339
        %v341 = vrot.slane %v340, 1
        %v342 = vadd.f32 %v340, %v341
        %v343 = vrot.slane %v284, 4
        %v344 = vadd.f32 %v284, %v343
        %v345 = vrot.slane %v344, 2
        %v346 = vadd.f32 %v344, %v345
        %v347 = vrot.slane %v346, 1
        %v348 = vadd.f32 %v346, %v347
        %v349 = vrot.slane %v285, 4
        %v350 = vadd.f32 %v285, %v349
        %v351 = vrot.slane %v350, 2
        %v352 = vadd.f32 %v350, %v351
        %v353 = vrot.slane %v352, 1
        %v354 = vadd.f32 %v352, %v353
        %v355 = vrot.slane %v286, 4
        %v356 = vadd.f32 %v286, %v355
        %v357 = vrot.slane %v356, 2
        %v358 = vadd.f32 %v356, %v357
        %v359 = vrot.slane %v358, 1
        %v360 = vadd.f32 %v358, %v359
        %vm361 = vcmask 1040384
        %v362 = vsel %vm361, %v313, %v320
        %vm363 = vcmask 1041408
        %v364 = vsel %vm363, %v362, %v327
        %vm365 = vcmask 1042432
        %v366 = vsel %vm365, %v364, %v334
        %vm367 = vcmask 1043456
        %v368 = vsel %vm367, %v366, %v342
        %vm369 = vcmask 1044480
        %v370 = vsel %vm369, %v368, 0.0
        %vm371 = vcmask 1045504
        %v372 = vsel %vm371, %v370, 0.0
        %vm373 = vcmask 1046528
        %v374 = vsel %vm373, %v372, 0.0
        %v375 = vsel %vm361, %v307, %v348
        %v376 = vsel %vm363, %v375, %v354
        %v377 = vsel %vm365, %v376, %v360
        %v378 = vsel %vm367, %v377, %v307
        %v379 = vsel %vm369, %v378, 0.0
        %v380 = vsel %vm371, %v379, 0.0
        %v381 = vsel %vm373, %v380, 0.0
        %v382 = vld [vmem:[#allocation2] sm:$0xff]
        %v383 = vld [vmem:[#allocation2 + $0x8] sm:$0xff]
        %v384 = vadd.f32 %v382, %v374
        %v385 = vadd.f32 %v383, %v381
        %386 = vst [vmem:[#allocation2] sm:$0xff] %v384
        %387 = vst [vmem:[#allocation2 + $0x8] sm:$0xff] %v385
        // Predicated region
        $region49: #{tpu_custom_call.1} parent=31 // pred_check
          %p388 = pneg %p238
        $region50: #{tpu_custom_call.1} parent=31 // pred_check_branch
          %390 = sbr.rel (%p388) target = $region52
        $region51: #{tpu_custom_call.1} parent=31 // pred_region
          %v391 = vld [vmem:[#allocation2] sm:$0xff]
          %v392 = vld [vmem:[#allocation2 + $0x8] sm:$0xff]
          %393 = vadd.xlane.f32.xlu0 %v391
          %v394 = vpop.xlane.xlu0 %393
          %395 = vadd.xlane.f32.xlu0 %v392
          %v396 = vpop.xlane.xlu0 %395
          %v397 = vrcp.pop %v396
          %v398 = vmul.f32 %v394, %v397
          %399 = vst [vmem:[%s237] sm:$0xff] %v398
        $region52: #{tpu_custom_call.1} parent=31 // pred_fallthru
          _
        %s400 = sand.u32 %s117, 1
        %s401 = scalar_lea.sflag [#allocation5], %s400
        %s402 = sand.u32 %s117, 1
        %s403 = smul.addr %s402, 8
        %s404 = scalar_lea.vmem [#allocation10], %s403
        // Predicated region
        $region53: #{tpu_custom_call.1} parent=31 // pred_check
          %p405 = pneg %p127
        $region54: #{tpu_custom_call.1} parent=31 // pred_check_branch
          %407 = sbr.rel (%p405) target = $region56
        $region55: #{tpu_custom_call.1} parent=31 // pred_region
          %s409 = ssub.s32 128, 128
          %410 = vsyncadd %s401, %s409
          %s411 = smul.addr %s26, 128
          %s412 = scalar_lea.hbm %s3, %s411
          %s414 = sshll.u32 %s404, 4
          %s415 = int_to_ptr.vmem [resolvable:$true] %s414
          %417 = dma.vmem_to_hbm [thread:$0]  %s415, 128, %s412, %s401
        $region56: #{tpu_custom_call.1} parent=31 // pred_fallthru
          _
      $region32: #{tpu_custom_call.1} parent=5 // pred_fallthru
        _
      %p418 = scmp.le.s32.totalorder 2, %s17
      // Predicated region
      $region57: #{tpu_custom_call.1} parent=5 // pred_check
        %p419 = pneg %p418
      $region58: #{tpu_custom_call.1} parent=5 // pred_check_branch
        %421 = sbr.rel (%p419) target = $region60
      $region59: #{tpu_custom_call.1} parent=5 // pred_region
        %s422 = ssub.s32 %s17, 2
        // Predicated region
        $region61: #{tpu_custom_call.1} parent=59 // pred_check
          %p423 = pneg %p133
        $region62: #{tpu_custom_call.1} parent=59 // pred_check_branch
          %425 = sbr.rel (%p423) target = $region64
        $region63: #{tpu_custom_call.1} parent=59 // pred_region
          %s426 = sand.u32 %s118, 1
          %s427 = scalar_lea.sflag [#allocation5], %s426
          %s428 = sand.u32 %s118, 1
          %s429 = smul.addr %s428, 8
          %s430 = scalar_lea.vmem [#allocation10], %s429
          %431 = dma.done %s427, 128
        $region64: #{tpu_custom_call.1} parent=59 // pred_fallthru
          _
      $region60: #{tpu_custom_call.1} parent=5 // pred_fallthru
        _
    $region6: #{tpu_custom_call.1} parent=1 // loop_footer
      %s21 = sadd.s32 1, %s17
    $region7: #{tpu_custom_call.1} parent=1 // loop_footer_branch
      %16 = sbr.rel target = $region3
    $region8: #{tpu_custom_call.1} parent=1 // loop_exit
      _
    %432 = vsyncpa [#allocation4], 1
    %s433 = scalar_lea.sflag [#allocation4], 1
    %434 = vsyncpa %s433, 1
    %435 = vsyncpa [#allocation8], 1
    %436 = vsyncpa [#allocation5], 1
    %s437 = scalar_lea.sflag [#allocation5], 1
    %438 = vsyncpa %s437, 1
    %439 = vsyncpa [#allocation6], 1
    %s440 = scalar_lea.sflag [#allocation6], 1
    %441 = vsyncpa %s440, 1

</llo_original>
